<compile_context>
chip_gen: v5e
topology: v5e:2x2
jax: 0.10.0
libtpu: 0.0.40
codegen_flags: <defaults>
</compile_context>

<pallas_src>
import functools
import math

import jax
import jax.numpy as jnp
from jax.experimental import pallas as pl
from jax.experimental.pallas import tpu as pltpu


# ----------------------------------------------------------------------------
# Kernel 1: fused feature_net (all hidden Linears + ReLU, final Linear)
# ----------------------------------------------------------------------------
def _feature_net_kernel(*refs):
    """refs = (x_ref, w0, b0, w1, b1, ..., w_final, b_final, o_ref)."""
    x_ref = refs[0]
    o_ref = refs[-1]
    wb = refs[1:-1]
    n_layers = len(wb) // 2
    x = x_ref[...]
    for li in range(n_layers):
        w = wb[2 * li][...]
        b = wb[2 * li + 1][...]
        x = jnp.dot(x, w, preferred_element_type=jnp.float32) + b
        if li < n_layers - 1:          # hidden layers ReLU; final layer: none
            x = jnp.maximum(x, 0.0)
    o_ref[...] = x.astype(o_ref.dtype)


def feature_net_fused(p, x):
    """x: (M, input_dim) f32 -> (M, feature_dim) f32, single pallas_call."""
    M, _ = x.shape
    wb_list = []
    for (w, b) in p["hidden"]:
        wb_list += [w, b]
    wf, bf = p["final"]
    wb_list += [wf, bf]
    f_out = wf.shape[1]

    in_specs = [pl.BlockSpec(x.shape, lambda i: (0, 0))]
    for a in wb_list:
        in_specs.append(pl.BlockSpec(a.shape, lambda i: (0, 0)))

    return pl.pallas_call(
        _feature_net_kernel,
        out_shape=jax.ShapeDtypeStruct((M, f_out), jnp.float32),
        grid=(1,),
        in_specs=in_specs,
        out_specs=pl.BlockSpec((M, f_out), lambda i: (0, 0)),
        compiler_params=pltpu.CompilerParams(
            dimension_semantics=("arbitrary",)),
    )(x, *wb_list)


# ----------------------------------------------------------------------------
# Kernel 2: per-domain fused (class_net + CE) and (ad_net + BCE)
#   grid = (num_src_domains,), marked "parallel" (v7x megacore split).
# ----------------------------------------------------------------------------
def _per_domain_kernel(feat_ref, lbl_ref, cw_ref, cb_ref,
                       w1_ref, b1_ref, w2_ref, b2_ref, w3_ref, b3_ref,
                       tl_ref, dl_ref, *, batch):
    x = feat_ref[0]                         # (2B, F): [0:B]=src feats, [B:]=tgt
    sfeat = x[:batch, :]                    # (B, F)

    # ---- class_net + mean cross entropy (logits stay in VMEM) ----
    logits = jnp.dot(sfeat, cw_ref[...],
                     preferred_element_type=jnp.float32) + cb_ref[...]   # (B,C)
    m = jnp.max(logits, axis=-1, keepdims=True)
    shifted = logits - m
    lse = jnp.log(jnp.sum(jnp.exp(shifted), axis=-1, keepdims=True))
    logp = shifted - lse
    cls = jax.lax.broadcasted_iota(jnp.int32, logits.shape, 1)
    onehot = (cls == lbl_ref[0]).astype(jnp.float32)                     # (B,C)
    tl_ref[0, 0] = jnp.mean(-jnp.sum(onehot * logp, axis=-1))

    # ---- ad_net l1 -> ReLU -> l2 -> ReLU -> l3 on stacked [src; tgt] ----
    h = jnp.dot(x, w1_ref[0], preferred_element_type=jnp.float32) + b1_ref[0]
    h = jnp.maximum(h, 0.0)
    h = jnp.dot(h, w2_ref[0], preferred_element_type=jnp.float32) + b2_ref[0]
    h = jnp.maximum(h, 0.0)
    z = jnp.dot(h, w3_ref[0], preferred_element_type=jnp.float32) + b3_ref[0]  # (2B,1)

    # BCE with all-ones labels, in logit space:
    #   -log(sigmoid(z))     = softplus(-z)
    #   -log(1 - sigmoid(z)) = softplus(z)
    def _softplus(v):
        return jnp.maximum(v, 0.0) + jnp.log(1.0 + jnp.exp(-jnp.abs(v)))

    loss_s = jnp.mean(_softplus(-z[:batch, :]))     # source vs. label 1
    loss_t = jnp.mean(_softplus(z[batch:, :]))      # target vs. label 1 on 1-p
    dl_ref[0, 0] = loss_s + loss_t


def per_domain_losses(class_params, ad_params, st_feats, labels, batch):
    """st_feats: (k, 2B, F); labels: (k, B, 1) int32 -> (train, domain) (k,1)."""
    k, twoB, F_ = st_feats.shape
    cw, cb = class_params
    C = cw.shape[1]
    H = ad_params["w1"].shape[2]

    kernel = functools.partial(_per_domain_kernel, batch=batch)
    in_specs = [
        pl.BlockSpec((1, twoB, F_), lambda i: (i, 0, 0)),   # stacked features
        pl.BlockSpec((1, batch, 1), lambda i: (i, 0, 0)),   # labels
        pl.BlockSpec((F_, C), lambda i: (0, 0)),            # class_net w
        pl.BlockSpec((1, C), lambda i: (0, 0)),             # class_net b
        pl.BlockSpec((1, F_, H), lambda i: (i, 0, 0)),      # ad l1 w
        pl.BlockSpec((1, 1, H), lambda i: (i, 0, 0)),       # ad l1 b
        pl.BlockSpec((1, H, H), lambda i: (i, 0, 0)),       # ad l2 w
        pl.BlockSpec((1, 1, H), lambda i: (i, 0, 0)),       # ad l2 b
        pl.BlockSpec((1, H, 1), lambda i: (i, 0, 0)),       # ad l3 w
        pl.BlockSpec((1, 1, 1), lambda i: (i, 0, 0)),       # ad l3 b
    ]
    out_shape = (jax.ShapeDtypeStruct((k, 1), jnp.float32),
                 jax.ShapeDtypeStruct((k, 1), jnp.float32))
    out_specs = (pl.BlockSpec((1, 1), lambda i: (i, 0)),
                 pl.BlockSpec((1, 1), lambda i: (i, 0)))

    train_l, domain_l = pl.pallas_call(
        kernel,
        out_shape=out_shape,
        grid=(k,),
        in_specs=in_specs,
        out_specs=out_specs,
        compiler_params=pltpu.CompilerParams(
            dimension_semantics=("parallel",)),
    )(st_feats, labels, cw, cb,
      ad_params["w1"], ad_params["b1"],
      ad_params["w2"], ad_params["b2"],
      ad_params["w3"], ad_params["b3"])
    return train_l, domain_l


# ----------------------------------------------------------------------------
# Model wiring (glue in plain JAX; heavy math lives in the 2 kernels above)
# ----------------------------------------------------------------------------
def darn_mlp_forward(params, configs, sinputs, soutputs, tinputs):
    k = configs["num_src_domains"]
    mu, gamma = configs["mu"], configs["gamma"]
    B = tinputs.shape[0]

    # One fused feature_net pass over all source batches + the target batch.
    x_all = jnp.concatenate(list(sinputs) + [tinputs], axis=0)   # ((k+1)*B, D)
    feats = feature_net_fused(params["feature_net"], x_all)      # ((k+1)*B, F)
    F_ = feats.shape[1]
    s_feats = feats[: k * B].reshape(k, B, F_)
    t_feat = feats[k * B:]                                       # (B, F)

    # Per-domain stacked [source_i ; target] feature matrix: (k, 2B, F).
    st_feats = jnp.concatenate(
        [s_feats, jnp.broadcast_to(t_feat[None], (k, B, F_))], axis=1)
    labels = jnp.stack(list(soutputs)).astype(jnp.int32).reshape(k, B, 1)

    train_l, domain_l = per_domain_losses(
        params["class_net"], params["ad_nets"], st_feats, labels, B)
    train_losses = train_l[:, 0]
    domain_losses = domain_l[:, 0]

    # TODO(synk): VATLoss unavailable in the reference source -> zeros.
    vat_losses = jnp.zeros((k,), jnp.float32)

    # _aggregation
    if k == 1:
        loss = (train_losses + 0.1 * vat_losses + mu * domain_losses)[0]
    else:  # mode == 'dynamic'
        g = (train_losses + 0.1 * vat_losses + mu * domain_losses) * gamma
        loss = jax.nn.logsumexp(g, axis=0) / gamma
    alpha = None
    return loss, alpha


# ----------------------------------------------------------------------------
# Deterministic parameter initialization (xavier_normal weights, zero biases)
# ----------------------------------------------------------------------------
def _xavier_normal(key, shape):
    fan_in, fan_out = shape[-2], shape[-1]
    std = math.sqrt(2.0 / (fan_in + fan_out))
    return (std * jax.random.normal(key, shape)).astype(jnp.float32)


def init_params(key, configs):
    input_dim = configs["input_dim"]
    hidden_layers = configs["hidden_layers"]
    num_classes = configs["num_classes"]
    k = configs["num_src_domains"]
    ad_hidden = 1024  # hard-coded in scAdversarialNetwork

    keys = iter(jax.random.split(key, 64))

    # feature_net: hidden Linears over [input_dim] + hidden_layers[:-1],
    #              final Linear -> hidden_layers[-1]
    fea_dims = [input_dim] + hidden_layers[:-1]
    hidden = []
    for i in range(len(fea_dims) - 1):
        hidden.append((_xavier_normal(next(keys), (fea_dims[i], fea_dims[i + 1])),
                       jnp.zeros((1, fea_dims[i + 1]), jnp.float32)))
    final = (_xavier_normal(next(keys), (fea_dims[-1], hidden_layers[-1])),
             jnp.zeros((1, hidden_layers[-1]), jnp.float32))
    feature_net = {"hidden": hidden, "final": final}

    class_net = (_xavier_normal(next(keys), (hidden_layers[-1], num_classes)),
                 jnp.zeros((1, num_classes), jnp.float32))

    # ad_nets: parameters stacked along a leading domain axis.
    F_ = hidden_layers[-1]
    ad_nets = {
        "w1": _xavier_normal(next(keys), (k, F_, ad_hidden)),
        "b1": jnp.zeros((k, 1, ad_hidden), jnp.float32),
        "w2": _xavier_normal(next(keys), (k, ad_hidden, ad_hidden)),
        "b2": jnp.zeros((k, 1, ad_hidden), jnp.float32),
        "w3": _xavier_normal(next(keys), (k, ad_hidden, 1)),
        "b3": jnp.zeros((k, 1, 1), jnp.float32),
    }

    return {"feature_net": feature_net, "class_net": class_net, "ad_nets": ad_nets}


# ----------------------------------------------------------------------------
# Main
# ----------------------------------------------------------------------------
if __name__ == "__main__":
    configs = {
        "input_dim": 32,
        "hidden_layers": [64, 32],   # feature_net: 32 -> 64(relu) -> 32
        "num_classes": 5,
        "num_src_domains": 2,
        "drop_rate": 0.5,
        "mode": "dynamic",
        "mu": 1e-2,
        "gamma": 10.0,
    }
    batch = 8

    key = jax.random.PRNGKey(0)
    kp, kd = jax.random.split(key)
    params = init_params(kp, configs)

    dkeys = jax.random.split(kd, 2 * configs["num_src_domains"] + 1)
    sinputs = [jax.random.normal(dkeys[i], (batch, configs["input_dim"]),
                                 jnp.float32)
               for i in range(configs["num_src_domains"])]
    soutputs = [jax.random.randint(dkeys[configs["num_src_domains"] + i],
                                   (batch,), 0, configs["num_classes"],
                                   dtype=jnp.int32)
                for i in range(configs["num_src_domains"])]
    tinputs = jax.random.normal(dkeys[-1], (batch, configs["input_dim"]),
                                jnp.float32)

    loss, alpha = darn_mlp_forward(params, configs, sinputs, soutputs, tinputs)
    loss = jax.block_until_ready(loss)
    assert loss.shape == () and jnp.isfinite(loss)
    print("KERNEL_OK")
</pallas_src>

<mosaic_0001>
module attributes {stable_mosaic.version = 11 : i64} {
  func.func @_feature_net_kernel(%arg0: i32, %arg1: memref<24x32xf32, #tpu.memory_space<vmem>>, %arg2: memref<32x64xf32, #tpu.memory_space<vmem>>, %arg3: memref<1x64xf32, #tpu.memory_space<vmem>>, %arg4: memref<64x32xf32, #tpu.memory_space<vmem>>, %arg5: memref<1x32xf32, #tpu.memory_space<vmem>>, %arg6: memref<24x32xf32, #tpu.memory_space<vmem>>) attributes {dimension_semantics = [#tpu.dimension_semantics<arbitrary>], iteration_bounds = array<i64: 1>, scalar_prefetch = 0 : i64, scratch_operands = 0 : i64, tpu.core_type = #tpu.core_type<tc>, window_params = [{pipeline_mode = #tpu.pipeline_mode<synchronous>, transform_indices = @transform_0, window_bounds = array<i64: 24, 32>}, {pipeline_mode = #tpu.pipeline_mode<synchronous>, transform_indices = @transform_1, window_bounds = array<i64: 32, 64>}, {pipeline_mode = #tpu.pipeline_mode<synchronous>, transform_indices = @transform_2, window_bounds = array<i64: 1, 64>}, {pipeline_mode = #tpu.pipeline_mode<synchronous>, transform_indices = @transform_3, window_bounds = array<i64: 64, 32>}, {pipeline_mode = #tpu.pipeline_mode<synchronous>, transform_indices = @transform_4, window_bounds = array<i64: 1, 32>}, {pipeline_mode = #tpu.pipeline_mode<synchronous>, transform_indices = @transform_5, window_bounds = array<i64: 24, 32>}]} {
    %c0 = arith.constant 0 : index
    %c0_0 = arith.constant 0 : index
    %0 = vector.load %arg1[%c0, %c0_0] : memref<24x32xf32, #tpu.memory_space<vmem>>, vector<24x32xf32>
    %c0_1 = arith.constant 0 : index
    %c0_2 = arith.constant 0 : index
    %1 = vector.load %arg2[%c0_1, %c0_2] : memref<32x64xf32, #tpu.memory_space<vmem>>, vector<32x64xf32>
    %c0_3 = arith.constant 0 : index
    %c0_4 = arith.constant 0 : index
    %2 = vector.load %arg3[%c0_3, %c0_4] : memref<1x64xf32, #tpu.memory_space<vmem>>, vector<1x64xf32>
    %cst = arith.constant dense<0.000000e+00> : vector<24x64xf32>
    %3 = tpu.matmul %0, %1, %cst {dimension_numbers = #tpu.dot_dimension_numbers<[1], [0], [0], [1], [0, 0, 1, 1], [], []>} : vector<24x32xf32>, vector<32x64xf32>, vector<24x64xf32> -> vector<24x64xf32>
    %4 = vector.broadcast %2 : vector<1x64xf32> to vector<24x64xf32>
    %5 = arith.addf %3, %4 : vector<24x64xf32>
    %cst_5 = arith.constant 0.000000e+00 : f32
    %6 = vector.broadcast %cst_5 : f32 to vector<24x64xf32>
    %7 = arith.maximumf %5, %6 : vector<24x64xf32>
    %c0_6 = arith.constant 0 : index
    %c0_7 = arith.constant 0 : index
    %8 = vector.load %arg4[%c0_6, %c0_7] : memref<64x32xf32, #tpu.memory_space<vmem>>, vector<64x32xf32>
    %c0_8 = arith.constant 0 : index
    %c0_9 = arith.constant 0 : index
    %9 = vector.load %arg5[%c0_8, %c0_9] : memref<1x32xf32, #tpu.memory_space<vmem>>, vector<1x32xf32>
    %cst_10 = arith.constant dense<0.000000e+00> : vector<24x32xf32>
    %10 = tpu.matmul %7, %8, %cst_10 {dimension_numbers = #tpu.dot_dimension_numbers<[1], [0], [0], [1], [0, 0, 1, 1], [], []>} : vector<24x64xf32>, vector<64x32xf32>, vector<24x32xf32> -> vector<24x32xf32>
    %11 = vector.broadcast %9 : vector<1x32xf32> to vector<24x32xf32>
    %12 = arith.addf %10, %11 : vector<24x32xf32>
    %c0_11 = arith.constant 0 : index
    %c0_12 = arith.constant 0 : index
    %13 = vector.load %arg6[%c0_11, %c0_12] : memref<24x32xf32, #tpu.memory_space<vmem>>, vector<24x32xf32>
    tpu.vector_store %arg6[%c0_11, %c0_12], %12 {strides = array<i32>} : memref<24x32xf32, #tpu.memory_space<vmem>>, vector<24x32xf32>,
    return
  }
  func.func @transform_0(%arg0: i32) -> (i32, i32) {
    %c0_i32 = arith.constant 0 : i32
    %c0_i32_0 = arith.constant 0 : i32
    %c0_i32_1 = arith.constant 0 : i32
    return %c0_i32, %c0_i32_0 : i32, i32
  }
  func.func @transform_1(%arg0: i32) -> (i32, i32) {
    %c0_i32 = arith.constant 0 : i32
    %c0_i32_0 = arith.constant 0 : i32
    %c0_i32_1 = arith.constant 0 : i32
    return %c0_i32, %c0_i32_0 : i32, i32
  }
  func.func @transform_2(%arg0: i32) -> (i32, i32) {
    %c0_i32 = arith.constant 0 : i32
    %c0_i32_0 = arith.constant 0 : i32
    %c0_i32_1 = arith.constant 0 : i32
    return %c0_i32, %c0_i32_0 : i32, i32
  }
  func.func @transform_3(%arg0: i32) -> (i32, i32) {
    %c0_i32 = arith.constant 0 : i32
    %c0_i32_0 = arith.constant 0 : i32
    %c0_i32_1 = arith.constant 0 : i32
    return %c0_i32, %c0_i32_0 : i32, i32
  }
  func.func @transform_4(%arg0: i32) -> (i32, i32) {
    %c0_i32 = arith.constant 0 : i32
    %c0_i32_0 = arith.constant 0 : i32
    %c0_i32_1 = arith.constant 0 : i32
    return %c0_i32, %c0_i32_0 : i32, i32
  }
  func.func @transform_5(%arg0: i32) -> (i32, i32) {
    %c0_i32 = arith.constant 0 : i32
    %c0_i32_0 = arith.constant 0 : i32
    %c0_i32_1 = arith.constant 0 : i32
    return %c0_i32, %c0_i32_0 : i32, i32
  }
}

</mosaic_0001>

<llo_original>
// kernel: tpu_custom_call.1
$region0: #{tpu_custom_call.1}
  #allocation0 [shape = 'u32[]', space=smem, size = 0x4, offset = 0x4, fixed_abs, tag = 'smem constant byte address 0x4 - core index']
  #allocation1 [shape = 'u32[72,128]{1,0:T(1,128)}', space=vmem, size = 0x9000, scoped, tag = 'internal scratch']
  %s0 = inlined_call_operand.vmem [shape: f32[24,32], index: 0, kind: input, shape index: {}]
  %s1 = inlined_call_operand.vmem [shape: f32[32,64], index: 1, kind: input, shape index: {}]
  %s2 = inlined_call_operand.vmem [shape: f32[1,64], index: 2, kind: input, shape index: {}]
  %s3 = inlined_call_operand.vmem [shape: f32[64,32], index: 3, kind: input, shape index: {}]
  %s4 = inlined_call_operand.vmem [shape: f32[1,32], index: 4, kind: input, shape index: {}]
  %s5 = inlined_call_operand.hbm [shape: f32[24,32], index: 5, kind: output, shape index: {}]
  %s6 = sld [smem:[#allocation0]]
  $region30: #{tpu_custom_call.1} parent=0
    _
  %s8 = ssub.s32 1, %s6
  %s9 = scalar_select 0, %s8, %s6
  $region1: #{tpu_custom_call.1} parent=0
    #allocation2 [shape = 'u8[12288]{0}', space=vmem, size = 0x3000, scoped, tag = 'output window, operand 0, single buffered']
    #allocation3 [shape = 's32[1]{0}', space=sflag, size = 0x4, scoped, tag = 'scoped memory for tpu_custom_call.1']
    %10 = vsyncpa [#allocation3], 0
    // Predicated region
    $region2: #{tpu_custom_call.1} parent=1 // pred_check
      _
    $region3: #{tpu_custom_call.1} parent=1 // pred_check_branch
      %12 = sbr.rel (0) target = $region5
    $region4: #{tpu_custom_call.1} parent=1 // pred_region
      _
    $region5: #{tpu_custom_call.1} parent=1 // pred_fallthru
      _
    // Predicated region
    $region6: #{tpu_custom_call.1} parent=1 // pred_check
      _
    $region7: #{tpu_custom_call.1} parent=1 // pred_check_branch
      %14 = sbr.rel (0) target = $region9
    $region8: #{tpu_custom_call.1} parent=1 // pred_region
      _
    $region9: #{tpu_custom_call.1} parent=1 // pred_fallthru
      _
    // Predicated region
    $region10: #{tpu_custom_call.1} parent=1 // pred_check
      _
    $region11: #{tpu_custom_call.1} parent=1 // pred_check_branch
      %16 = sbr.rel (0) target = $region13
    $region12: #{tpu_custom_call.1} parent=1 // pred_region
      _
    $region13: #{tpu_custom_call.1} parent=1 // pred_fallthru
      _
    // Predicated region
    $region14: #{tpu_custom_call.1} parent=1 // pred_check
      _
    $region15: #{tpu_custom_call.1} parent=1 // pred_check_branch
      %18 = sbr.rel (0) target = $region17
    $region16: #{tpu_custom_call.1} parent=1 // pred_region
      _
    $region17: #{tpu_custom_call.1} parent=1 // pred_fallthru
      _
    // Predicated region
    $region18: #{tpu_custom_call.1} parent=1 // pred_check
      _
    $region19: #{tpu_custom_call.1} parent=1 // pred_check_branch
      %20 = sbr.rel (0) target = $region21
    $region20: #{tpu_custom_call.1} parent=1 // pred_region
      _
    $region21: #{tpu_custom_call.1} parent=1 // pred_fallthru
      _
    %v21 = vld [vmem:[%s0] sm:$0xff]
    %v22 = vld [vmem:[%s0 + $0x8] sm:$0xff]
    %v23 = vld [vmem:[%s0 + $0x10] sm:$0xff]
    %v24 = vld [vmem:[%s1] sm:$0xff]
    %v25 = vld [vmem:[%s1 + $0x8] sm:$0xff]
    %v26 = vld [vmem:[%s1 + $0x10] sm:$0xff]
    %v27 = vld [vmem:[%s1 + $0x18] sm:$0xff]
    %v28 = vld [vmem:[%s2] sm:$0x1]
    %v30 = vperm.slane %v28, 0
    %vm32 = vcmask 261120
    %v34 = vsel %vm32, %v21, 0
    %v37 = vsel %vm32, %v22, 0
    %v40 = vsel %vm32, %v23, 0
    %42 = vmatpush.msra.mxu0 0.0
    %43 = vmatpush.msra.mxu0 0.0
    %44 = vmatpush.msra.mxu0 0.0
    %45 = vmatpush.msra.mxu0 0.0
    %46 = vmatpush.msra.mxu0 0.0
    %47 = vmatpush.msra.mxu0 0.0
    %48 = vmatpush.msra.mxu0 0.0
    %49 = vmatpush.msra.mxu0 0.0
    %50 = vmatpush.msra.mxu0 0.0
    %51 = vmatpush.msra.mxu0 0.0
    %52 = vmatpush.msra.mxu0 0.0
    %53 = vmatpush.msra.mxu0 0.0
    %54 = vmatpush.msra.mxu0 %v27
    %55 = vmatpush.msra.mxu0 %v26
    %56 = vmatpush.msra.mxu0 %v25
    %57 = vmatpush.msra.mxu0 %v24
    %58 = vmatmul.f32.gmra.mxu0 %v34
    %v59 = vpop.f32.mrf.mxu0
    %v60 = vadd.f32 %v30, %v59
    %61 = vmatmul.f32.gmra.mxu0 %v37
    %v62 = vpop.f32.mrf.mxu0
    %v63 = vadd.f32 %v30, %v62
    %64 = vmatmul.f32.gmra.mxu0 %v40
    %v65 = vpop.f32.mrf.mxu0
    %v66 = vadd.f32 %v30, %v65
    %67 = vdwg.mxu0
    %v68 = vmax.f32 %v60, 0.0
    %v69 = vmax.f32 %v63, 0.0
    %v70 = vmax.f32 %v66, 0.0
    %v71 = vld [vmem:[%s3] sm:$0xff]
    %v72 = vld [vmem:[%s3 + $0x8] sm:$0xff]
    %v73 = vld [vmem:[%s3 + $0x10] sm:$0xff]
    %v74 = vld [vmem:[%s3 + $0x18] sm:$0xff]
    %v75 = vld [vmem:[%s3 + $0x20] sm:$0xff]
    %v76 = vld [vmem:[%s3 + $0x28] sm:$0xff]
    %v77 = vld [vmem:[%s3 + $0x30] sm:$0xff]
    %v78 = vld [vmem:[%s3 + $0x38] sm:$0xff]
    %v79 = vld [vmem:[%s4] sm:$0x1]
    %v81 = vperm.slane %v79, 0
    %vm83 = vcmask 523264
    %v85 = vsel %vm83, %v68, 0
    %v88 = vsel %vm83, %v69, 0
    %v91 = vsel %vm83, %v70, 0
    %93 = vmatpush.msra.mxu0 0.0
    %94 = vmatpush.msra.mxu0 0.0
    %95 = vmatpush.msra.mxu0 0.0
    %96 = vmatpush.msra.mxu0 0.0
    %97 = vmatpush.msra.mxu0 0.0
    %98 = vmatpush.msra.mxu0 0.0
    %99 = vmatpush.msra.mxu0 0.0
    %100 = vmatpush.msra.mxu0 0.0
    %101 = vmatpush.msra.mxu0 %v78
    %102 = vmatpush.msra.mxu0 %v77
    %103 = vmatpush.msra.mxu0 %v76
    %104 = vmatpush.msra.mxu0 %v75
    %105 = vmatpush.msra.mxu0 %v74
    %106 = vmatpush.msra.mxu0 %v73
    %107 = vmatpush.msra.mxu0 %v72
    %108 = vmatpush.msra.mxu0 %v71
    %109 = vmatmul.f32.gmra.mxu0 %v85
    %v110 = vpop.f32.mrf.mxu0
    %v111 = vadd.f32 %v81, %v110
    %112 = vmatmul.f32.gmra.mxu0 %v88
    %v113 = vpop.f32.mrf.mxu0
    %v114 = vadd.f32 %v81, %v113
    %115 = vmatmul.f32.gmra.mxu0 %v91
    %v116 = vpop.f32.mrf.mxu0
    %v117 = vadd.f32 %v81, %v116
    %118 = vdwg.mxu0
    %119 = vst.msk [vmem:[#allocation2] sm:$0xff] %vm32, %v111
    %120 = vst.msk [vmem:[#allocation2 + $0x8] sm:$0xff] %vm32, %v114
    %121 = vst.msk [vmem:[#allocation2 + $0x10] sm:$0xff] %vm32, %v117
    // Predicated region
    $region22: #{tpu_custom_call.1} parent=1 // pred_check
      _
    $region23: #{tpu_custom_call.1} parent=1 // pred_check_branch
      %123 = sbr.rel (0) target = $region25
    $region24: #{tpu_custom_call.1} parent=1 // pred_region
      %125 = vsyncadd [#allocation3], 0
      %s126 = sshll.u32 [#allocation2], 4
      %s127 = int_to_ptr.vmem [resolvable:$true] %s126
      %s128 = sshll.u32 %s5, 4
      %s129 = int_to_ptr.hbm [resolvable:$true] %s128
      %134 = dma.vmem_to_hbm [thread:$0]  %s127, 384, %s129, [#allocation3], 128, 128, 8
    $region25: #{tpu_custom_call.1} parent=1 // pred_fallthru
      _
    // Predicated region
    $region26: #{tpu_custom_call.1} parent=1 // pred_check
      _
    $region27: #{tpu_custom_call.1} parent=1 // pred_check_branch
      %136 = sbr.rel (0) target = $region29
    $region28: #{tpu_custom_call.1} parent=1 // pred_region
      %138 = dma.done [#allocation3], 384
    $region29: #{tpu_custom_call.1} parent=1 // pred_fallthru
      _
    %139 = vsyncpa [#allocation3], 1

</llo_original>
